<compile_context>
chip_gen: v7x
topology: tpu7x:2x2x1
jax: 0.10.0
libtpu: 0.0.40
codegen_flags: <defaults>
</compile_context>

<pallas_src>
import jax
import jax.numpy as jnp
from jax import lax
from jax.experimental import pallas as pl
from jax.experimental.pallas import tpu as pltpu

EPS = 1e-5


def hardswish(x):
    # PyTorch nn.Hardswish: x * relu6(x + 3) / 6
    return x * jnp.clip(x + 3.0, 0.0, 6.0) * (1.0 / 6.0)


# ------------------------------- Pallas kernel ------------------------------ #

def _focus_conv_kernel(x_ref, w_ref, b_ref, o_ref):
    # x_ref: (TM, G*K) f32   -- TM pixel-groups x (G pixels * K=4*C_in feats)
    # w_ref: (G*K, G*N) bf16 -- block-diagonal, BN-folded 1x1 conv weight
    # b_ref: (1, G*N)  f32   -- BN-folded bias, tiled over the G pixel slots
    # o_ref: (TM, G*N) f32   -- lane-dense output strip
    x = x_ref[...].astype(jnp.bfloat16)                               # bf16 MXU inputs
    y = jnp.dot(x, w_ref[...], preferred_element_type=jnp.float32)    # f32 accumulate
    y = y + b_ref[...]                                                # folded BN bias (f32)
    o_ref[...] = hardswish(y).astype(o_ref.dtype)                     # hardswish in f32


def _pick_row_tile(m):
    """Largest row tile (multiple of 8) dividing m that still leaves >=2 grid steps."""
    for t in (256, 128, 64, 32, 16, 8):
        if m % t == 0 and m // t >= 2:
            return t
    return m


def _pick_pixel_group(w2, k, n):
    """Smallest divisor of the output row width that makes both block last-dims >=128 lanes."""
    for g in range(1, w2 + 1):
        if w2 % g == 0 and g * min(k, n) >= 128:
            return g
    return w2


def focus_conv_pallas(x_groups, big_w, big_b, tile_rows):
    m, gk = x_groups.shape
    gn = big_w.shape[1]
    return pl.pallas_call(
        _focus_conv_kernel,
        out_shape=jax.ShapeDtypeStruct((m, gn), jnp.float32),
        grid=(m // tile_rows,),
        in_specs=[
            pl.BlockSpec((tile_rows, gk), lambda i: (i, 0)),   # lane-dense input strip
            pl.BlockSpec((gk, gn), lambda i: (0, 0)),          # weight, resident
            pl.BlockSpec((1, gn), lambda i: (0, 0)),           # bias, resident
        ],
        out_specs=pl.BlockSpec((tile_rows, gn), lambda i: (i, 0)),    # lane-dense output strip
        compiler_params=pltpu.CompilerParams(
            dimension_semantics=("parallel",)),                # independent strips (2 TCs on v7x)
    )(x_groups, big_w, big_b)


# -------------------------------- forward pass ------------------------------ #

def focus_forward(x, params):
    """Focus forward (eval mode). x: NCHW float32 -> NCHW float32."""
    B, C, H, W = x.shape
    assert H % 2 == 0 and W % 2 == 0, "Focus requires even spatial dims"
    H2, W2 = H // 2, W // 2
    K = 4 * C

    w = params['w']            # (N, 4C, 1, 1)  PyTorch OIHW
    bn = params['bn']
    N = w.shape[0]

    # ---- fold eval-mode BatchNorm into the (bias-less) 1x1 conv ----
    scale = bn['gamma'] / jnp.sqrt(bn['var'] + EPS)
    w_f = w[:, :, 0, 0] * scale[:, None]             # (N, 4C)
    b_f = bn['beta'] - bn['mean'] * scale            # (N,)

    # ---- fold the Focus patch-concat order into the weight rows ----
    # torch cat order: [TL, BL, TR, BR]; kernel space-to-depth feature order is
    # (row parity, col parity, channel) = [TL, TR, BL, BR].
    perm = jnp.concatenate([
        jnp.arange(0 * C, 1 * C),   # TL
        jnp.arange(2 * C, 3 * C),   # TR
        jnp.arange(1 * C, 2 * C),   # BL
        jnp.arange(3 * C, 4 * C),   # BR
    ])
    w_k = jnp.transpose(w_f[:, perm], (1, 0))        # (K, N), kernel feature order

    # ---- pack G pixels per row into the lane axis (lane-dense in & out) ----
    G = _pick_pixel_group(W2, K, N)
    big_w = jnp.kron(jnp.eye(G, dtype=jnp.float32), w_k).astype(jnp.bfloat16)   # (G*K, G*N)
    big_b = jnp.tile(b_f, (G,)).reshape(1, G * N).astype(jnp.float32)

    # ---- space-to-depth + pixel-group packing: a single transpose ----
    wg = W2 // G
    x6 = x.reshape(B, C, H2, 2, wg, G, 2)            # (b, c, h2, ph, wg, g, pw)
    x6 = jnp.transpose(x6, (0, 2, 4, 5, 3, 6, 1))    # (b, h2, wg, g, ph, pw, c)
    Mg = B * H2 * wg
    x_groups = x6.reshape(Mg, G * K)                 # rows = pixel groups, cols = g*4C+ph*2C+pw*C+c

    tile_rows = _pick_row_tile(Mg)
    y_groups = focus_conv_pallas(x_groups, big_w, big_b, tile_rows)   # (Mg, G*N)

    # ---- unpack back to NCHW ----
    y = y_groups.reshape(B, H2, wg, G, N)
    y = jnp.transpose(y, (0, 4, 1, 2, 3))            # (b, n, h2, wg, g)
    return y.reshape(B, N, H2, W2)


# ---------------------------- parameters (synthetic) ------------------------ #

def init_params(key, in_channels, out_channels):
    k_w, k_g, k_b, k_m, k_v = jax.random.split(key, 5)
    c4 = 4 * in_channels
    return dict(
        w=jax.random.normal(k_w, (out_channels, c4, 1, 1), jnp.float32) * 0.1,
        bn=dict(
            gamma=jax.random.uniform(k_g, (out_channels,), minval=0.5, maxval=1.5),
            beta=jax.random.normal(k_b, (out_channels,)) * 0.1,
            mean=jax.random.normal(k_m, (out_channels,)) * 0.1,
            var=jax.random.uniform(k_v, (out_channels,), minval=0.5, maxval=1.5),
        ),
    )


# ----------------------------- pure-JAX reference --------------------------- #

def reference_forward(x, params):
    """Literal translation of the PyTorch Focus.forward (eval-mode BN)."""
    tl = x[..., 0::2, 0::2]
    tr = x[..., 0::2, 1::2]
    bl = x[..., 1::2, 0::2]
    br = x[..., 1::2, 1::2]
    xc = jnp.concatenate([tl, bl, tr, br], axis=1)    # torch cat order
    y = lax.conv_general_dilated(
        xc, params['w'], window_strides=(1, 1), padding='VALID',
        dimension_numbers=('NCHW', 'OIHW', 'NCHW'),
        precision=lax.Precision.HIGHEST)
    bn = params['bn']
    scale = bn['gamma'] / jnp.sqrt(bn['var'] + EPS)
    shift = bn['beta'] - bn['mean'] * scale
    y = y * scale[None, :, None, None] + shift[None, :, None, None]
    return hardswish(y)


# ------------------------------------ main ----------------------------------- #

if __name__ == "__main__":
    key = jax.random.PRNGKey(0)
    k_x, k_p = jax.random.split(key)

    B, C_in, C_out, H, W = 2, 4, 32, 16, 16
    x = jax.random.normal(k_x, (B, C_in, H, W), dtype=jnp.float32)
    params = init_params(k_p, C_in, C_out)

    out = jax.jit(focus_forward)(x, params)
    out = jax.block_until_ready(out)
    assert out.shape == (B, C_out, H // 2, W // 2), out.shape

    ref = reference_forward(x, params)
    max_err = float(jnp.max(jnp.abs(out - ref)))
    # bf16 MXU inputs with f32 accumulation -> slightly looser tolerance than pure f32.
    assert max_err < 5e-2, f"max abs err {max_err}"

    print("KERNEL_OK")
</pallas_src>

<mosaic_0001>
module attributes {stable_mosaic.version = 11 : i64} {
  func.func @_focus_conv_kernel(%arg0: i32, %arg1: memref<8x128xf32, #tpu.memory_space<vmem>>, %arg2: memref<128x256xbf16, #tpu.memory_space<vmem>>, %arg3: memref<1x256xf32, #tpu.memory_space<vmem>>, %arg4: memref<8x256xf32, #tpu.memory_space<vmem>>) attributes {dimension_semantics = [#tpu.dimension_semantics<parallel>], iteration_bounds = array<i64: 2>, scalar_prefetch = 0 : i64, scratch_operands = 0 : i64, tpu.core_type = #tpu.core_type<tc>, window_params = [{transform_indices = @transform_0, window_bounds = array<i64: 8, 128>}, {pipeline_mode = #tpu.pipeline_mode<synchronous>, transform_indices = @transform_1, window_bounds = array<i64: 128, 256>}, {pipeline_mode = #tpu.pipeline_mode<synchronous>, transform_indices = @transform_2, window_bounds = array<i64: 1, 256>}, {transform_indices = @transform_3, window_bounds = array<i64: 8, 256>}]} {
    %c0 = arith.constant 0 : index
    %c0_0 = arith.constant 0 : index
    %0 = vector.load %arg1[%c0, %c0_0] : memref<8x128xf32, #tpu.memory_space<vmem>>, vector<8x128xf32>
    %1 = arith.truncf %0 : vector<8x128xf32> to vector<8x128xbf16>
    %c0_1 = arith.constant 0 : index
    %c0_2 = arith.constant 0 : index
    %2 = vector.load %arg2[%c0_1, %c0_2] : memref<128x256xbf16, #tpu.memory_space<vmem>>, vector<128x256xbf16>
    %cst = arith.constant dense<0.000000e+00> : vector<8x256xf32>
    %3 = tpu.matmul %1, %2, %cst {dimension_numbers = #tpu.dot_dimension_numbers<[1], [0], [0], [1], [0, 0, 1, 1], [], []>} : vector<8x128xbf16>, vector<128x256xbf16>, vector<8x256xf32> -> vector<8x256xf32>
    %c0_3 = arith.constant 0 : index
    %c0_4 = arith.constant 0 : index
    %4 = vector.load %arg3[%c0_3, %c0_4] : memref<1x256xf32, #tpu.memory_space<vmem>>, vector<1x256xf32>
    %5 = vector.broadcast %4 : vector<1x256xf32> to vector<8x256xf32>
    %6 = arith.addf %3, %5 : vector<8x256xf32>
    %cst_5 = arith.constant 3.000000e+00 : f32
    %7 = vector.broadcast %cst_5 : f32 to vector<8x256xf32>
    %8 = arith.addf %6, %7 : vector<8x256xf32>
    %cst_6 = arith.constant 0.000000e+00 : f32
    %cst_7 = arith.constant 6.000000e+00 : f32
    %9 = vector.broadcast %cst_6 : f32 to vector<8x256xf32>
    %10 = arith.maximumf %9, %8 : vector<8x256xf32>
    %11 = vector.broadcast %cst_7 : f32 to vector<8x256xf32>
    %12 = arith.minimumf %11, %10 : vector<8x256xf32>
    %13 = arith.mulf %6, %12 : vector<8x256xf32>
    %cst_8 = arith.constant 0.166666672 : f32
    %14 = vector.broadcast %cst_8 : f32 to vector<8x256xf32>
    %15 = arith.mulf %13, %14 : vector<8x256xf32>
    %c0_9 = arith.constant 0 : index
    %c0_10 = arith.constant 0 : index
    %16 = vector.load %arg4[%c0_9, %c0_10] : memref<8x256xf32, #tpu.memory_space<vmem>>, vector<8x256xf32>
    tpu.vector_store %arg4[%c0_9, %c0_10], %15 {strides = array<i32>} : memref<8x256xf32, #tpu.memory_space<vmem>>, vector<8x256xf32>,
    return
  }
  func.func @transform_0(%arg0: i32) -> (i32, i32) {
    %c0_i32 = arith.constant 0 : i32
    %c0_i32_0 = arith.constant 0 : i32
    return %arg0, %c0_i32 : i32, i32
  }
  func.func @transform_1(%arg0: i32) -> (i32, i32) {
    %c0_i32 = arith.constant 0 : i32
    %c0_i32_0 = arith.constant 0 : i32
    %c0_i32_1 = arith.constant 0 : i32
    return %c0_i32, %c0_i32_0 : i32, i32
  }
  func.func @transform_2(%arg0: i32) -> (i32, i32) {
    %c0_i32 = arith.constant 0 : i32
    %c0_i32_0 = arith.constant 0 : i32
    %c0_i32_1 = arith.constant 0 : i32
    return %c0_i32, %c0_i32_0 : i32, i32
  }
  func.func @transform_3(%arg0: i32) -> (i32, i32) {
    %c0_i32 = arith.constant 0 : i32
    %c0_i32_0 = arith.constant 0 : i32
    return %arg0, %c0_i32 : i32, i32
  }
}

</mosaic_0001>

<llo_original>
// kernel: tile.8
$region0: #{tile.8}
  #allocation0 [shape = 's32[1]{0}', space=sflag, size = 0x4, scoped, tag = 'scoped memory for tile.8']
  %s0 = inlined_call_operand.vmem [shape: f32[32], index: 0, kind: input, shape index: {}]
  %s1 = inlined_call_operand.vmem [shape: f32[8,32], index: 1, kind: output, shape index: {}]
  // Predicated region
  $region2: #{tile.8} parent=0 // pred_check
    _
  $region3: #{tile.8} parent=0 // pred_check_branch
    %3 = sbr.rel (0) target = $region5
  $region4: #{tile.8} parent=0 // pred_region
    _
  $region5: #{tile.8} parent=0 // pred_fallthru
    _
  %v4 = vld [vmem:[%s0] ss:$0 sm:$0xff]
  %5 = vst [vmem:[%s1] sm:$0xff] %v4

// kernel: tile.9
$region0: #{tile.9}
  %s0 = inlined_call_operand.vmem [shape: f32[8,32], index: 0, kind: input, shape index: {}]
  %s1 = inlined_call_operand.vmem [shape: f32[1,256], index: 1, kind: output, shape index: {}]
  $region1: #{tile.9} parent=0
    #allocation0 [shape = 'u8[8192]{0}', space=vmem, size = 0x2000, scoped, tag = 'scoped mem for output reshape']
    %s2 = smov 3
    %v3 = vld [vmem:[%s0] ss:$4 sm:%s2]
    %vm4 = vcmask 261120
    %5 = vst.msk [vmem:[#allocation0] ss:$8 sm:$0x3] %vm4, %v3
    %s6 = scalar_lea.vmem %s0, 3
    %s7 = smov 3
    %v8 = vld [vmem:[%s6] ss:$4 sm:%s7]
    %9 = vrot.lane.b32.xlu0 %v8, 96
    %v10 = vpop.permute.xlu0 %9
    %vm11 = vcmask 1048320
    %12 = vst.msk [vmem:[#allocation0] ss:$8 sm:$0x3] %vm11, %v10
    %s13 = scalar_lea.vmem %s0, 2
    %s14 = smov 3
    %v15 = vld [vmem:[%s13] ss:$4 sm:%s14]
    %16 = vrot.lane.b32.xlu0 %v15, 64
    %v17 = vpop.permute.xlu0 %16
    %vm18 = vcmask 785920
    %19 = vst.msk [vmem:[#allocation0] ss:$8 sm:$0x3] %vm18, %v17
    %s20 = scalar_lea.vmem %s0, 1
    %s21 = smov 3
    %v22 = vld [vmem:[%s20] ss:$4 sm:%s21]
    %23 = vrot.lane.b32.xlu0 %v22, 32
    %v24 = vpop.permute.xlu0 %23
    %vm25 = vcmask 523520
    %26 = vst.msk [vmem:[#allocation0] ss:$8 sm:$0x3] %vm25, %v24
    %s28 = sshllo.u32 0, 1
    %v30 = vld [vmem:[#allocation0] sm:%s28]
    %s31 = sshllo.u32 0, 1
    %32 = vst [vmem:[%s1] sm:%s31] %v30
    %s33 = scalar_lea.vmem [#allocation0], 8
    %v34 = vld [vmem:[%s33] sm:%s28]
    %s35 = sshllo.u32 0, 1
    %s36 = scalar_lea.vmem %s1, 1
    %37 = vst [vmem:[%s36] sm:%s35] %v34

// kernel: focus_forward.1
$region0: #{focus_forward.1}
  #allocation0 [shape = 'u32[]', space=smem, size = 0x4, offset = 0x4, fixed_abs, tag = 'smem constant byte address 0x4 - core index']
  #allocation1 [shape = 'u32[144,128]{1,0:T(1,128)}', space=vmem, size = 0x12000, scoped, tag = 'internal scratch']
  %s0 = inlined_call_operand.vmem [shape: f32[16,128], index: 0, kind: input, shape index: {}]
  %s1 = inlined_call_operand.vmem [shape: bf16[128,256], index: 1, kind: input, shape index: {}]
  %s2 = inlined_call_operand.vmem [shape: f32[1,256], index: 2, kind: input, shape index: {}]
  %s3 = inlined_call_operand.vmem [shape: f32[16,256], index: 3, kind: output, shape index: {}]
  %s4 = sld [smem:[#allocation0]]
  $region45: #{focus_forward.1} parent=0
    _
  %s6 = ssub.s32 1, %s4
  %s7 = scalar_select 0, %s6, %s4
  loop: start=0, step=1, limit=4
  $region2: #{focus_forward.1} parent=0 // loop_pre_header
    _
  $region3: #{focus_forward.1} parent=0 // loop_header
    %s9 = sphi 0, %s13
    %p10 = scmp.ge.s32.totalorder %s9, 4
    %s19 = sphi 0, %s21
    %s22 = sphi 0, %s19
    %s23 = sphi 0, %s22
    %s39 = sphi 0, %s23
    %s43 = sphi 0, %s43
    %s45 = sphi 0, %s43
    %s46 = sphi 0, %s45
    %s60 = sphi 0, %s46
    %s64 = sphi 0, %s64
    %s66 = sphi 0, %s64
    %s67 = sphi 0, %s66
    %s81 = sphi 0, %s67
    %s87 = sphi 0, %s89
    %s90 = sphi 0, %s87
    %s91 = sphi 0, %s90
    %s107 = sphi 0, %s91
  $region4: #{focus_forward.1} parent=0 // loop_header_branch
    %12 = sbr.rel (%p10) target = $region8
  $region5: #{focus_forward.1} parent=0 // loop_body
    %s14 = ssub.s32 %s9, 1
    %s15 = ssub.s32 %s9, 2
    %s16 = sadd.s32 %s9, 1
    %s17 = ssub.s32 %s9, %s16
    %p18 = scmp.eq.s32.totalorder %s17, 0
    %s20 = sadd.s32 %s19, 1
    %s21 = scalar_select %p18, %s19, %s20
    %p24 = pneg %p18
    %p25 = scmp.eq.s32.totalorder %s9, 1
    %p26 = por %p24, %p25
    %p27 = scmp.ne.s32.totalorder %s19, %s22
    %p28 = scmp.eq.s32.totalorder %s9, 0
    %p29 = por %p27, %p28
    %p30 = scmp.ne.s32.totalorder %s19, %s22
    %p31 = scmp.eq.s32.totalorder %s14, 1
    %p32 = por %p30, %p31
    %p33 = scmp.ne.s32.totalorder %s22, %s23
    %p34 = scmp.eq.s32.totalorder %s14, 0
    %p35 = por %p33, %p34
    %p36 = scmp.ne.s32.totalorder %s22, %s23
    %p37 = scmp.eq.s32.totalorder %s15, 1
    %p38 = por %p36, %p37
    %p40 = scmp.ne.s32.totalorder %s23, %s39
    %p41 = scmp.eq.s32.totalorder %s15, 0
    %p42 = por %p40, %p41
    %s44 = sadd.s32 %s43, 1
    %p47 = scmp.eq.s32.totalorder %s9, 1
    %p48 = scmp.ne.s32.totalorder %s43, %s45
    %p49 = scmp.eq.s32.totalorder %s9, 0
    %p50 = por %p48, %p49
    %p51 = scmp.ne.s32.totalorder %s43, %s45
    %p52 = scmp.eq.s32.totalorder %s14, 1
    %p53 = por %p51, %p52
    %p54 = scmp.ne.s32.totalorder %s45, %s46
    %p55 = scmp.eq.s32.totalorder %s14, 0
    %p56 = por %p54, %p55
    %p57 = scmp.ne.s32.totalorder %s45, %s46
    %p58 = scmp.eq.s32.totalorder %s15, 1
    %p59 = por %p57, %p58
    %p61 = scmp.ne.s32.totalorder %s46, %s60
    %p62 = scmp.eq.s32.totalorder %s15, 0
    %p63 = por %p61, %p62
    %s65 = sadd.s32 %s64, 1
    %p68 = scmp.eq.s32.totalorder %s9, 1
    %p69 = scmp.ne.s32.totalorder %s64, %s66
    %p70 = scmp.eq.s32.totalorder %s9, 0
    %p71 = por %p69, %p70
    %p72 = scmp.ne.s32.totalorder %s64, %s66
    %p73 = scmp.eq.s32.totalorder %s14, 1
    %p74 = por %p72, %p73
    %p75 = scmp.ne.s32.totalorder %s66, %s67
    %p76 = scmp.eq.s32.totalorder %s14, 0
    %p77 = por %p75, %p76
    %p78 = scmp.ne.s32.totalorder %s66, %s67
    %p79 = scmp.eq.s32.totalorder %s15, 1
    %p80 = por %p78, %p79
    %p82 = scmp.ne.s32.totalorder %s67, %s81
    %p83 = scmp.eq.s32.totalorder %s15, 0
    %p84 = por %p82, %p83
    %s85 = ssub.s32 %s9, %s16
    %p86 = scmp.eq.s32.totalorder %s85, 0
    %s88 = sadd.s32 %s87, 1
    %s89 = scalar_select %p86, %s87, %s88
    %p92 = pneg %p86
    %p93 = scmp.eq.s32.totalorder %s9, 1
    %p94 = por %p92, %p93
    %p95 = scmp.ne.s32.totalorder %s87, %s90
    %p96 = scmp.eq.s32.totalorder %s9, 0
    %p97 = por %p95, %p96
    %p98 = scmp.ne.s32.totalorder %s87, %s90
    %p99 = scmp.eq.s32.totalorder %s14, 1
    %p100 = por %p98, %p99
    %p101 = scmp.ne.s32.totalorder %s90, %s91
    %p102 = scmp.eq.s32.totalorder %s14, 0
    %p103 = por %p101, %p102
    %p104 = scmp.ne.s32.totalorder %s90, %s91
    %p105 = scmp.eq.s32.totalorder %s15, 1
    %p106 = por %p104, %p105
    %p108 = scmp.ne.s32.totalorder %s91, %s107
    %p109 = scmp.eq.s32.totalorder %s15, 0
    %p110 = por %p108, %p109
    %p111 = scmp.le.s32.totalorder 1, %s9
    %p112 = scmp.lt.s32.totalorder %s9, 3
    %p113 = pnand %p111, %p112
    %p114 = pneg %p113
    // Predicated region
    $region9: #{focus_forward.1} parent=5 // pred_check
      _
    $region10: #{focus_forward.1} parent=5 // pred_check_branch
      %116 = sbr.rel (%p113) target = $region12
    $region11: #{focus_forward.1} parent=5 // pred_region
      %s117 = ssub.s32 %s9, 1
      // Predicated region
      $region13: #{focus_forward.1} parent=11 // pred_check
        %p118 = pneg %p56
      $region14: #{focus_forward.1} parent=11 // pred_check_branch
        %120 = sbr.rel (%p118) target = $region16
      $region15: #{focus_forward.1} parent=11 // pred_region
        _
      $region16: #{focus_forward.1} parent=11 // pred_fallthru
        _
      // Predicated region
      $region17: #{focus_forward.1} parent=11 // pred_check
        %p121 = pneg %p77
      $region18: #{focus_forward.1} parent=11 // pred_check_branch
        %123 = sbr.rel (%p121) target = $region20
      $region19: #{focus_forward.1} parent=11 // pred_region
        _
      $region20: #{focus_forward.1} parent=11 // pred_fallthru
        _
    $region12: #{focus_forward.1} parent=5 // pred_fallthru
      _
    %p124 = scmp.lt.s32.totalorder %s9, 2
    // Predicated region
    $region21: #{focus_forward.1} parent=5 // pred_check
      %p125 = pneg %p124
    $region22: #{focus_forward.1} parent=5 // pred_check_branch
      %127 = sbr.rel (%p125) target = $region24
    $region23: #{focus_forward.1} parent=5 // pred_region
      // Predicated region
      $region25: #{focus_forward.1} parent=23 // pred_check
        %p128 = pneg %p29
      $region26: #{focus_forward.1} parent=23 // pred_check_branch
        %130 = sbr.rel (%p128) target = $region28
      $region27: #{focus_forward.1} parent=23 // pred_region
        %p131 = scmp.lt.s32.totalorder %s9, 1
        %s132 = scalar_select %p131, %s9, 1
        %s133 = smul.addr %s132, 8
        %s134 = scalar_lea.vmem %s0, %s133
      $region28: #{focus_forward.1} parent=23 // pred_fallthru
        _
    $region24: #{focus_forward.1} parent=5 // pred_fallthru
      _
    %p135 = scmp.le.s32.totalorder 1, %s9
    %p136 = scmp.lt.s32.totalorder %s9, 3
    %p137 = pnand %p135, %p136
    %p138 = pneg %p137
    // Predicated region
    $region29: #{focus_forward.1} parent=5 // pred_check
      _
    $region30: #{focus_forward.1} parent=5 // pred_check_branch
      %140 = sbr.rel (%p137) target = $region32
    $region31: #{focus_forward.1} parent=5 // pred_region
      %s141 = ssub.s32 %s9, 1
      %p142 = scmp.lt.s32.totalorder %s14, 1
      %s143 = scalar_select %p142, %s14, 1
      %s144 = smul.addr %s143, 8
      %s145 = scalar_lea.vmem %s0, %s144
      %p146 = pneg %p35
      %p147 = pneg %p32
      %p148 = pneg %p56
      %p149 = pneg %p53
      %p150 = pneg %p77
      %p151 = pneg %p74
      %p152 = pneg %p103
      %p153 = pneg %p100
      %p154 = scmp.lt.s32.totalorder %s14, 1
      %s155 = scalar_select %p154, %s14, 1
      %s156 = smul.addr %s155, 2
      %s157 = smul.addr %s156, 8
      %s158 = scalar_lea.vmem %s3, %s157
      %p159 = scmp.lt.s32.totalorder %s14, 1
      %s160 = scalar_select %p159, %s14, 1
      %s161 = smul.addr %s160, 8
      %s162 = scalar_lea.vmem %s0, %s161
      %p163 = scmp.lt.s32.totalorder %s14, 1
      %s164 = scalar_select %p163, %s14, 1
      %s165 = smul.addr %s164, 2
      %s166 = smul.addr %s165, 8
      %s167 = scalar_lea.vmem %s3, %s166
      %v169 = vld [vmem:[%s162] sm:$0xff]
      %v170 = vpack.c.bf16 %v169, %v169
      %v171 = vld [vmem:[%s1] sm:$0xff]
      %v172 = vld [vmem:[%s1 + $0x8] sm:$0xff]
      %v173 = vld [vmem:[%s1 + $0x10] sm:$0xff]
      %v174 = vld [vmem:[%s1 + $0x18] sm:$0xff]
      %v175 = vld [vmem:[%s1 + $0x20] sm:$0xff]
      %v176 = vld [vmem:[%s1 + $0x28] sm:$0xff]
      %v177 = vld [vmem:[%s1 + $0x30] sm:$0xff]
      %v178 = vld [vmem:[%s1 + $0x38] sm:$0xff]
      %v179 = vld [vmem:[%s1 + $0x40] sm:$0xff]
      %v180 = vld [vmem:[%s1 + $0x48] sm:$0xff]
      %v181 = vld [vmem:[%s1 + $0x50] sm:$0xff]
      %v182 = vld [vmem:[%s1 + $0x58] sm:$0xff]
      %v183 = vld [vmem:[%s1 + $0x60] sm:$0xff]
      %v184 = vld [vmem:[%s1 + $0x68] sm:$0xff]
      %v185 = vld [vmem:[%s1 + $0x70] sm:$0xff]
      %v186 = vld [vmem:[%s1 + $0x78] sm:$0xff]
      %v187 = vld [vmem:[%s2] sm:$0x3]
      %v189 = vlaneseq
      %v190 = vshrl.u32 %v189, 7
      %v191 = vsub.s32 0, %v190
      %v192 = vrot.slane %v187, %v191
      %v193 = vlaneseq
      %v194 = vshrl.u32 %v193, 7
      %v195 = vsub.s32 1, %v194
      %v196 = vrot.slane %v187, %v195
      %v215 = vunpack.c.l.b16 %v171
      %v216 = vunpack.c.h.b16 %v171
      %v217 = vunpack.c.l.b16 %v172
      %v218 = vunpack.c.h.b16 %v172
      %v219 = vunpack.c.l.b16 %v173
      %v220 = vunpack.c.h.b16 %v173
      %v221 = vunpack.c.l.b16 %v174
      %v222 = vunpack.c.h.b16 %v174
      %v223 = vunpack.c.l.b16 %v175
      %v224 = vunpack.c.h.b16 %v175
      %v225 = vunpack.c.l.b16 %v176
      %v226 = vunpack.c.h.b16 %v176
      %v227 = vunpack.c.l.b16 %v177
      %v228 = vunpack.c.h.b16 %v177
      %v229 = vunpack.c.l.b16 %v178
      %v230 = vunpack.c.h.b16 %v178
      %v231 = vunpack.c.l.b16 %v179
      %v232 = vunpack.c.h.b16 %v179
      %v233 = vunpack.c.l.b16 %v180
      %v234 = vunpack.c.h.b16 %v180
      %v235 = vunpack.c.l.b16 %v181
      %v236 = vunpack.c.h.b16 %v181
      %v237 = vunpack.c.l.b16 %v182
      %v238 = vunpack.c.h.b16 %v182
      %v239 = vunpack.c.l.b16 %v183
      %v240 = vunpack.c.h.b16 %v183
      %v241 = vunpack.c.l.b16 %v184
      %v242 = vunpack.c.h.b16 %v184
      %v243 = vunpack.c.l.b16 %v185
      %v244 = vunpack.c.h.b16 %v185
      %v245 = vunpack.c.l.b16 %v186
      %v246 = vunpack.c.h.b16 %v186
      %v247 = vpack.c.b16 %v217, %v215
      %v248 = vpack.c.b16 %v218, %v216
      %v249 = vpack.c.b16 %v221, %v219
      %v250 = vpack.c.b16 %v222, %v220
      %v251 = vpack.c.b16 %v225, %v223
      %v252 = vpack.c.b16 %v226, %v224
      %v253 = vpack.c.b16 %v229, %v227
      %v254 = vpack.c.b16 %v230, %v228
      %v255 = vpack.c.b16 %v233, %v231
      %v256 = vpack.c.b16 %v234, %v232
      %v257 = vpack.c.b16 %v237, %v235
      %v258 = vpack.c.b16 %v238, %v236
      %v259 = vpack.c.b16 %v241, %v239
      %v260 = vpack.c.b16 %v242, %v240
      %v261 = vpack.c.b16 %v245, %v243
      %v262 = vpack.c.b16 %v246, %v244
      %279 = vmatprep.subr.bf16.mxu0 %v248
      %280 = vmatpush1.bf16.msra.mxu0 %v247
      %281 = vmatprep.subr.bf16.mxu0 %v250
      %282 = vmatpush1.bf16.msra.mxu0 %v249
      %283 = vmatprep.subr.bf16.mxu0 %v252
      %284 = vmatpush1.bf16.msra.mxu0 %v251
      %285 = vmatprep.subr.bf16.mxu0 %v254
      %286 = vmatpush1.bf16.msra.mxu0 %v253
      %287 = vmatprep.subr.bf16.mxu0 %v256
      %288 = vmatpush1.bf16.msra.mxu0 %v255
      %289 = vmatprep.subr.bf16.mxu0 %v258
      %290 = vmatpush1.bf16.msra.mxu0 %v257
      %291 = vmatprep.subr.bf16.mxu0 %v260
      %292 = vmatpush1.bf16.msra.mxu0 %v259
      %293 = vmatprep.subr.bf16.mxu0 %v262
      %294 = vmatpush1.bf16.msra.mxu0 %v261
      %295 = vmatprep.subr.bf16.mxu0 0
      %296 = vmatpush1.bf16.msra.mxu0 0
      %297 = vmatprep.subr.bf16.mxu0 0
      %298 = vmatpush1.bf16.msra.mxu0 0
      %299 = vmatprep.subr.bf16.mxu0 0
      %300 = vmatpush1.bf16.msra.mxu0 0
      %301 = vmatprep.subr.bf16.mxu0 0
      %302 = vmatpush1.bf16.msra.mxu0 0
      %303 = vmatprep.subr.bf16.mxu0 0
      %304 = vmatpush1.bf16.msra.mxu0 0
      %305 = vmatprep.subr.bf16.mxu0 0
      %306 = vmatpush1.bf16.msra.mxu0 0
      %307 = vmatprep.subr.bf16.mxu0 0
      %308 = vmatpush1.bf16.msra.mxu0 0
      %309 = vmatprep.subr.bf16.mxu0 0
      %310 = vmatpush1.bf16.msra.mxu0 0
      %311 = vmatprep.mubr.bf16.mxu0 0
      %312 = vmatmul.mubr.bf16.gmra.mrb[0].mxu0 %v170
      %v313 = vpop.f32.mrb[0].mxu0
      %v314 = vadd.f32 %v192, %v313
      %v315 = vpop.f32.mrb[0].mxu0
      %v316 = vadd.f32 %v196, %v315
      %v317 = vpop.f32.mrb[0].mxu0
      %v318 = vpop.f32.mrb[0].mxu0
      %319 = vdwg.mxu0
      %v320 = vadd.f32 %v314, 3.0
      %v321 = vadd.f32 %v316, 3.0
      %v322 = vmax.f32 %v320, 0.0
      %v323 = vmax.f32 %v321, 0.0
      %v324 = vmin.f32 %v322, 6.0
      %v325 = vmin.f32 %v323, 6.0
      %v326 = vmul.f32 %v314, %v324
      %v327 = vmul.f32 %v316, %v325
      %v328 = vmul.f32 %v326, 0.16666667
      %v329 = vmul.f32 %v327, 0.16666667
      %330 = vst [vmem:[%s167] sm:$0xff] %v328
      %331 = vst [vmem:[%s167 + $0x8] sm:$0xff] %v329
      %p332 = scmp.lt.s32.totalorder %s14, 1
      %s333 = scalar_select %p332, %s14, 1
      %s334 = smul.addr %s333, 2
      %s335 = smul.addr %s334, 8
      %s336 = scalar_lea.vmem %s3, %s335
      // Predicated region
      $region33: #{focus_forward.1} parent=31 // pred_check
        %p337 = pneg %p100
      $region34: #{focus_forward.1} parent=31 // pred_check_branch
        %339 = sbr.rel (%p337) target = $region36
      $region35: #{focus_forward.1} parent=31 // pred_region
        _
      $region36: #{focus_forward.1} parent=31 // pred_fallthru
        _
    $region32: #{focus_forward.1} parent=5 // pred_fallthru
      _
    %p340 = scmp.le.s32.totalorder 2, %s9
    // Predicated region
    $region37: #{focus_forward.1} parent=5 // pred_check
      %p341 = pneg %p340
    $region38: #{focus_forward.1} parent=5 // pred_check_branch
      %343 = sbr.rel (%p341) target = $region40
    $region39: #{focus_forward.1} parent=5 // pred_region
      %s344 = ssub.s32 %s9, 2
      // Predicated region
      $region41: #{focus_forward.1} parent=39 // pred_check
        %p345 = pneg %p106
      $region42: #{focus_forward.1} parent=39 // pred_check_branch
        %347 = sbr.rel (%p345) target = $region44
      $region43: #{focus_forward.1} parent=39 // pred_region
        %p348 = scmp.lt.s32.totalorder %s15, 1
        %s349 = scalar_select %p348, %s15, 1
        %s350 = smul.addr %s349, 2
        %s351 = smul.addr %s350, 8
        %s352 = scalar_lea.vmem %s3, %s351
      $region44: #{focus_forward.1} parent=39 // pred_fallthru
        _
    $region40: #{focus_forward.1} parent=5 // pred_fallthru
      _
  $region6: #{focus_forward.1} parent=0 // loop_footer
    %s13 = sadd.s32 1, %s9
  $region7: #{focus_forward.1} parent=0 // loop_footer_branch
    %8 = sbr.rel target = $region3
  $region8: #{focus_forward.1} parent=0 // loop_exit
    _

</llo_original>
